<compile_context>
chip_gen: v7x
topology: tpu7x:2x2x1
jax: 0.10.0
libtpu: 0.0.40
codegen_flags: <defaults>
</compile_context>

<pallas_src>
import functools

import numpy as np
import jax
import jax.numpy as jnp
from jax import lax
from jax.experimental import pallas as pl
from jax.experimental.pallas import tpu as pltpu


def _round_up(x, m):
    return ((x + m - 1) // m) * m


def _pick_tile_rows(H, WP):
    """Generation-aware tile height (multiple of 8 image rows)."""
    try:
        vmem = int(pltpu.get_tpu_info().vmem_capacity_bytes)
    except Exception:                       # conservative (v7x-sized) fallback
        vmem = 64 * 1024 * 1024
    # ~40 B live per image element per grid step (1 f32 input tile + 4 f32/i32
    # outputs, double buffered); keep the working set <= 1/16 of physical VMEM
    # so the default scoped-VMEM limit is respected on every generation.
    rows = (vmem // 16) // (WP * 40)
    rows = max(8, (rows // 8) * 8)
    return int(min(rows, _round_up(H, 8), 2048))


# ----------------------------- Pallas kernel ------------------------------ #
def _lowstar_grid_kernel(f_ref, fnext_ref,
                         hval_ref, hcrit_ref, vval_ref, vcrit_ref,
                         *, W, TILE_H):
    # f_ref     : (TILE_H, WP) row tile of the vertex image (f32)
    # fnext_ref : (8, WP)      first rows of the *next* tile (bottom halo)
    # Outputs (lane-dense (TILE_H, WP) blocks):
    #   hval/hcrit : horizontal edge (r,c)-(r,c+1) value / critical vertex
    #   vval/vcrit : vertical   edge (r,c)-(r+1,c) value / critical vertex
    # Entries at c >= W-1 (horizontal) or global r >= H-1 (vertical) are
    # padding and never consumed by the wrapper.
    WP = f_ref.shape[1]
    f = f_ref[...]

    row_l = lax.broadcasted_iota(jnp.int32, (TILE_H, WP), 0)
    col = lax.broadcasted_iota(jnp.int32, (TILE_H, WP), 1)
    row0 = pl.program_id(0) * TILE_H
    vid = (row_l + row0) * W + col          # flat row-major vertex id (true W)

    # horizontal edges: right neighbour via one-lane rotation (wrap = don't care)
    f_r = pltpu.roll(f, WP - 1, 1)          # f_r[r, c] = f[r, (c + 1) % WP]
    hval_ref[...] = jnp.maximum(f, f_r)
    hcrit_ref[...] = jnp.where(f >= f_r, vid, vid + 1)

    # vertical edges: down neighbour via one-row rotation; last row of the tile
    # takes its neighbour from the halo block of the next tile.
    f_d = pltpu.roll(f, TILE_H - 1, 0)      # f_d[r, c] = f[(r + 1) % TILE_H, c]
    f_d = jnp.where(row_l == TILE_H - 1, fnext_ref[0:1, :], f_d)
    vval_ref[...] = jnp.maximum(f, f_d)
    vcrit_ref[...] = jnp.where(f >= f_d, vid, vid + W)


def lower_star_grid(f_img):
    """Pallas lower-star filtration on the H x W grid 1-skeleton.

    Returns lane-dense (HP, WP) arrays: hval/hcrit (valid at r < H, c < W-1)
    and vval/vcrit (valid at r < H-1, c < W)."""
    H, W = f_img.shape
    WP = _round_up(W, 128)
    TILE_H = _pick_tile_rows(H, WP)
    HP = _round_up(H, TILE_H)

    # +inf padding: padded entries are never consumed; if a bug ever made them
    # reachable they would show up as inf instead of a plausible 0.0.
    f_pad = jnp.pad(f_img.astype(jnp.float32),
                    ((0, HP + 8 - H), (0, WP - W)),
                    constant_values=jnp.inf)

    kernel = functools.partial(_lowstar_grid_kernel, W=W, TILE_H=TILE_H)
    out_shape = (jax.ShapeDtypeStruct((HP, WP), jnp.float32),
                 jax.ShapeDtypeStruct((HP, WP), jnp.int32),
                 jax.ShapeDtypeStruct((HP, WP), jnp.float32),
                 jax.ShapeDtypeStruct((HP, WP), jnp.int32))
    hval, hcrit, vval, vcrit = pl.pallas_call(
        kernel,
        out_shape=out_shape,
        grid=(HP // TILE_H,),
        in_specs=[
            pl.BlockSpec((TILE_H, WP), lambda i: (i, 0)),
            # 8-row halo: first rows of the next tile (the padded image has 8
            # spare rows so the last grid step stays in bounds).
            pl.BlockSpec((8, WP), lambda i: ((i + 1) * (TILE_H // 8), 0)),
        ],
        out_specs=tuple(pl.BlockSpec((TILE_H, WP), lambda i: (i, 0))
                        for _ in range(4)),
        compiler_params=pltpu.CompilerParams(
            dimension_semantics=("parallel",)),
    )(f_pad, f_pad)
    return hval, hcrit, vval, vcrit


def _extract_edges(f_img, h_idx, v_idx):
    """Device side: kernel + gather of valid edge entries + stable sort order."""
    hval, hcrit, vval, vcrit = lower_star_grid(f_img)
    edge_vals = jnp.concatenate([hval.ravel()[h_idx], vval.ravel()[v_idx]])
    edge_crit = jnp.concatenate([hcrit.ravel()[h_idx], vcrit.ravel()[v_idx]])
    # stable argsort == np.lexsort((arange(E), edge_vals)) tie-break, computed
    # on device so only O(E) vectors cross the host boundary.
    order = jnp.argsort(edge_vals)
    return edge_vals, edge_crit, order


# --------------------- host-side 0-dim persistence pairing ----------------- #
def _h0_pairs(vert_vals, edge_vals, edge_crit, order, edges):
    """Deterministic union-find H0 pairing (elder rule).

    TODO(synk): bats.reduce (F2 boundary-matrix reduction) is a data-dependent
    sequential algorithm with no clean Pallas equivalent; it runs on host."""
    n = vert_vals.shape[0]
    parent = np.arange(n)
    birth_vertex = np.arange(n)             # 0-simplex critical vertex == id

    def find(x):
        while parent[x] != x:
            parent[x] = parent[parent[x]]
            x = parent[x]
        return x

    finite = []
    for e in order:
        e = int(e)
        u, v = int(edges[e, 0]), int(edges[e, 1])
        ru, rv = find(u), find(v)
        if ru == rv:
            continue
        bu, bv = int(birth_vertex[ru]), int(birth_vertex[rv])
        # elder rule: component with larger (birth value, vertex id) dies
        if (vert_vals[bu], bu) >= (vert_vals[bv], bv):
            dead_birth, dead, survivor = bu, ru, rv
        else:
            dead_birth, dead, survivor = bv, rv, ru
        parent[dead] = survivor
        finite.append((vert_vals[dead_birth], vert_vals[int(edge_crit[e])]))

    roots = {find(i) for i in range(n)}
    infinite = [(vert_vals[int(birth_vertex[r])], np.inf) for r in sorted(roots)]
    return np.array(finite + infinite, dtype=np.float32).reshape(-1, 2)


# -------------------------- fixed complex X (grid) ------------------------- #
def grid_complex(H, W):
    """Fixed complex X: 1-skeleton of the H x W grid (enough for maxdim=0)."""
    n = H * W
    vid = np.arange(n, dtype=np.int32).reshape(H, W)
    h_edges = np.stack([vid[:, :-1].ravel(), vid[:, 1:].ravel()], axis=1)
    v_edges = np.stack([vid[:-1, :].ravel(), vid[1:, :].ravel()], axis=1)
    edges = np.concatenate([h_edges, v_edges], axis=0).astype(np.int32)
    return {"H": H, "W": W, "n": n, "edges": edges}


# ------------------------------ module wrapper ----------------------------- #
class SublevelsetDiagram:
    """Sublevel-set persistence diagram layer (maxdim=0) on a fixed grid complex."""

    def __init__(self, X, maxdim=0, reduction_flags=()):
        # TODO(synk): only grid complexes are supported here; a general complex
        # would need a (slower) gather-based lower_star_filtration path.
        self.H, self.W = int(X["H"]), int(X["W"])
        self.n = int(X["n"])
        self.edges = np.asarray(X["edges"], np.int32)
        self.maxdim = maxdim
        self.reduction_flags = reduction_flags

        # static prep hoisted out of forward(): device-resident gather indices
        # mapping the lane-dense (HP, WP) kernel outputs back to edge order.
        WP = _round_up(self.W, 128)
        rr, cc = np.meshgrid(np.arange(self.H), np.arange(self.W - 1), indexing="ij")
        h_idx = (rr * WP + cc).reshape(-1)
        rr, cc = np.meshgrid(np.arange(self.H - 1), np.arange(self.W), indexing="ij")
        v_idx = (rr * WP + cc).reshape(-1)
        self._h_idx = jnp.asarray(h_idx, jnp.int32)
        self._v_idx = jnp.asarray(v_idx, jnp.int32)
        self._device_fn = jax.jit(_extract_edges)

    def forward(self, f):
        f_img = jnp.asarray(f, jnp.float32).reshape(self.H, self.W)
        edge_vals, edge_crit, order = self._device_fn(
            f_img, self._h_idx, self._v_idx)
        # one batched device->host transfer; union-find pairing runs on host
        f_np, ev_np, ec_np, ord_np = jax.device_get(
            (f_img.reshape(-1), edge_vals, edge_crit, order))
        dgm0 = _h0_pairs(f_np, ev_np, ec_np, ord_np, self.edges)
        return (jnp.asarray(dgm0),)          # tuple of diagrams, dims 0..maxdim

    __call__ = forward


# ----------------------------------- main ----------------------------------- #
if __name__ == "__main__":
    H, W = 8, 8
    key = jax.random.PRNGKey(0)
    f = jax.random.normal(key, (H, W), dtype=jnp.float32)

    X = grid_complex(H, W)
    layer = SublevelsetDiagram(X, maxdim=0, reduction_flags=())

    (dgm0,) = layer(f)
    dgm0 = jax.block_until_ready(dgm0)

    f_np = np.asarray(f).ravel()
    edges = X["edges"]

    # kernel-level check: lower-star values / critical vertices of every edge
    ev, ec, _ = jax.device_get(layer._device_fn(f, layer._h_idx, layer._v_idx))
    ref_vals = np.maximum(f_np[edges[:, 0]], f_np[edges[:, 1]])
    assert np.allclose(ev, ref_vals)
    assert np.allclose(f_np[ec], ref_vals)

    # diagram-level checks: connected grid -> (n-1) finite bars + 1 inf bar
    d = np.asarray(dgm0)
    n = X["n"]
    assert d.shape == (n, 2)
    assert np.all(d[:, 0] <= d[:, 1])
    assert np.isinf(d[:, 1]).sum() == 1
    assert np.isclose(d[np.isinf(d[:, 1]), 0][0], f_np.min())

    print("KERNEL_OK")
</pallas_src>

<mosaic_0001>
module attributes {stable_mosaic.version = 11 : i64} {
  func.func @_lowstar_grid_kernel(%arg0: i32, %arg1: memref<8x128xf32, #tpu.memory_space<vmem>>, %arg2: memref<8x128xf32, #tpu.memory_space<vmem>>, %arg3: memref<8x128xf32, #tpu.memory_space<vmem>>, %arg4: memref<8x128xi32, #tpu.memory_space<vmem>>, %arg5: memref<8x128xf32, #tpu.memory_space<vmem>>, %arg6: memref<8x128xi32, #tpu.memory_space<vmem>>) attributes {dimension_semantics = [#tpu.dimension_semantics<parallel>], iteration_bounds = array<i64: 1>, scalar_prefetch = 0 : i64, scratch_operands = 0 : i64, tpu.core_type = #tpu.core_type<tc>, window_params = [{transform_indices = @transform_0, window_bounds = array<i64: 8, 128>}, {transform_indices = @transform_1, window_bounds = array<i64: 8, 128>}, {transform_indices = @transform_2, window_bounds = array<i64: 8, 128>}, {transform_indices = @transform_3, window_bounds = array<i64: 8, 128>}, {transform_indices = @transform_4, window_bounds = array<i64: 8, 128>}, {transform_indices = @transform_5, window_bounds = array<i64: 8, 128>}]} {
    %c0 = arith.constant 0 : index
    %c0_0 = arith.constant 0 : index
    %0 = vector.load %arg1[%c0, %c0_0] : memref<8x128xf32, #tpu.memory_space<vmem>>, vector<8x128xf32>
    %1 = tpu.iota {dimensions = array<i32: 0>} : vector<8x128xi32>
    %2 = tpu.iota {dimensions = array<i32: 1>} : vector<8x128xi32>
    %c8_i32 = arith.constant 8 : i32
    %3 = arith.muli %arg0, %c8_i32 : i32
    %4 = vector.broadcast %3 : i32 to vector<8x128xi32>
    %5 = arith.addi %1, %4 : vector<8x128xi32>
    %c8_i32_1 = arith.constant 8 : i32
    %6 = vector.broadcast %c8_i32_1 : i32 to vector<8x128xi32>
    %7 = arith.muli %5, %6 : vector<8x128xi32>
    %8 = arith.addi %7, %2 : vector<8x128xi32>
    %c127_i32 = arith.constant 127 : i32
    %9 = tpu.dynamic_rotate %0 by %c127_i32 dim 1 : vector<8x128xf32>, i32 -> vector<8x128xf32>
    %10 = arith.maximumf %0, %9 : vector<8x128xf32>
    %c0_2 = arith.constant 0 : index
    %c0_3 = arith.constant 0 : index
    %11 = vector.load %arg3[%c0_2, %c0_3] : memref<8x128xf32, #tpu.memory_space<vmem>>, vector<8x128xf32>
    tpu.vector_store %arg3[%c0_2, %c0_3], %10 {strides = array<i32>} : memref<8x128xf32, #tpu.memory_space<vmem>>, vector<8x128xf32>,
    %12 = arith.cmpf oge, %0, %9 : vector<8x128xf32>
    %c1_i32 = arith.constant 1 : i32
    %13 = vector.broadcast %c1_i32 : i32 to vector<8x128xi32>
    %14 = arith.addi %8, %13 : vector<8x128xi32>
    %15 = arith.select %12, %8, %14 : vector<8x128xi1>, vector<8x128xi32>
    %c0_4 = arith.constant 0 : index
    %c0_5 = arith.constant 0 : index
    %16 = vector.load %arg4[%c0_4, %c0_5] : memref<8x128xi32, #tpu.memory_space<vmem>>, vector<8x128xi32>
    tpu.vector_store %arg4[%c0_4, %c0_5], %15 {strides = array<i32>} : memref<8x128xi32, #tpu.memory_space<vmem>>, vector<8x128xi32>,
    %c7_i32 = arith.constant 7 : i32
    %17 = tpu.dynamic_rotate %0 by %c7_i32 dim 0 : vector<8x128xf32>, i32 -> vector<8x128xf32>
    %c7_i32_6 = arith.constant 7 : i32
    %18 = vector.broadcast %c7_i32_6 : i32 to vector<8x128xi32>
    %19 = arith.cmpi eq, %1, %18 : vector<8x128xi32>
    %c0_7 = arith.constant 0 : index
    %c0_8 = arith.constant 0 : index
    %20 = vector.load %arg2[%c0_7, %c0_8] : memref<8x128xf32, #tpu.memory_space<vmem>>, vector<1x128xf32>
    %21 = vector.shape_cast %20 : vector<1x128xf32> to vector<1x128xf32>
    %22 = vector.broadcast %21 : vector<1x128xf32> to vector<8x128xf32>
    %23 = arith.select %19, %22, %17 : vector<8x128xi1>, vector<8x128xf32>
    %24 = arith.maximumf %0, %23 : vector<8x128xf32>
    %c0_9 = arith.constant 0 : index
    %c0_10 = arith.constant 0 : index
    %25 = vector.load %arg5[%c0_9, %c0_10] : memref<8x128xf32, #tpu.memory_space<vmem>>, vector<8x128xf32>
    tpu.vector_store %arg5[%c0_9, %c0_10], %24 {strides = array<i32>} : memref<8x128xf32, #tpu.memory_space<vmem>>, vector<8x128xf32>,
    %26 = arith.cmpf oge, %0, %23 : vector<8x128xf32>
    %c8_i32_11 = arith.constant 8 : i32
    %27 = vector.broadcast %c8_i32_11 : i32 to vector<8x128xi32>
    %28 = arith.addi %8, %27 : vector<8x128xi32>
    %29 = arith.select %26, %8, %28 : vector<8x128xi1>, vector<8x128xi32>
    %c0_12 = arith.constant 0 : index
    %c0_13 = arith.constant 0 : index
    %30 = vector.load %arg6[%c0_12, %c0_13] : memref<8x128xi32, #tpu.memory_space<vmem>>, vector<8x128xi32>
    tpu.vector_store %arg6[%c0_12, %c0_13], %29 {strides = array<i32>} : memref<8x128xi32, #tpu.memory_space<vmem>>, vector<8x128xi32>,
    return
  }
  func.func @transform_0(%arg0: i32) -> (i32, i32) {
    %c0_i32 = arith.constant 0 : i32
    %c0_i32_0 = arith.constant 0 : i32
    return %arg0, %c0_i32 : i32, i32
  }
  func.func @transform_1(%arg0: i32) -> (i32, i32) {
    %c1_i32 = arith.constant 1 : i32
    %0 = arith.addi %arg0, %c1_i32 : i32
    %c1_i32_0 = arith.constant 1 : i32
    %1 = arith.muli %0, %c1_i32_0 : i32
    %c0_i32 = arith.constant 0 : i32
    %c0_i32_1 = arith.constant 0 : i32
    return %1, %c0_i32 : i32, i32
  }
  func.func @transform_2(%arg0: i32) -> (i32, i32) {
    %c0_i32 = arith.constant 0 : i32
    %c0_i32_0 = arith.constant 0 : i32
    return %arg0, %c0_i32 : i32, i32
  }
  func.func @transform_3(%arg0: i32) -> (i32, i32) {
    %c0_i32 = arith.constant 0 : i32
    %c0_i32_0 = arith.constant 0 : i32
    return %arg0, %c0_i32 : i32, i32
  }
  func.func @transform_4(%arg0: i32) -> (i32, i32) {
    %c0_i32 = arith.constant 0 : i32
    %c0_i32_0 = arith.constant 0 : i32
    return %arg0, %c0_i32 : i32, i32
  }
  func.func @transform_5(%arg0: i32) -> (i32, i32) {
    %c0_i32 = arith.constant 0 : i32
    %c0_i32_0 = arith.constant 0 : i32
    return %arg0, %c0_i32 : i32, i32
  }
}

</mosaic_0001>

<llo_original>
// kernel: _extract_edges.1
$region0: #{_extract_edges.1}
  #allocation0 [shape = 'u32[]', space=smem, size = 0x4, offset = 0x4, fixed_abs, tag = 'smem constant byte address 0x4 - core index']
  #allocation1 [shape = 'u32[144,128]{1,0:T(1,128)}', space=vmem, size = 0x12000, scoped, tag = 'internal scratch']
  %s0 = inlined_call_operand.vmem [shape: f32[16,128], index: 0, kind: input, shape index: {}, may-alias: {0,1}]
  %s1 = inlined_call_operand.vmem [shape: f32[16,128], index: 1, kind: input, shape index: {}, may-alias: {0,1}]
  %s2 = inlined_call_operand.vmem [shape: f32[8,128], index: 2, kind: output, shape index: {0}]
  %s3 = inlined_call_operand.vmem [shape: s32[8,128], index: 3, kind: output, shape index: {1}]
  %s4 = inlined_call_operand.vmem [shape: f32[8,128], index: 4, kind: output, shape index: {2}]
  %s5 = inlined_call_operand.vmem [shape: s32[8,128], index: 5, kind: output, shape index: {3}]
  %6 = xla_tuple %s2, %s3, %s4, %s5
  %s7 = sld [smem:[#allocation0]]
  $region42: #{_extract_edges.1} parent=0
    _
  %s9 = ssub.s32 1, %s7
  %s10 = scalar_select 0, %s9, %s7
  // Predicated region
  $region2: #{_extract_edges.1} parent=0 // pred_check
    _
  $region3: #{_extract_edges.1} parent=0 // pred_check_branch
    %12 = sbr.rel (0) target = $region5
  $region4: #{_extract_edges.1} parent=0 // pred_region
    _
  $region5: #{_extract_edges.1} parent=0 // pred_fallthru
    _
  // Predicated region
  $region6: #{_extract_edges.1} parent=0 // pred_check
    _
  $region7: #{_extract_edges.1} parent=0 // pred_check_branch
    %14 = sbr.rel (0) target = $region9
  $region8: #{_extract_edges.1} parent=0 // pred_region
    %s15 = sadd.s32 0, 1
    %p16 = scmp.lt.s32.totalorder %s15, 1
    %s17 = scalar_select %p16, %s15, 1
    %s18 = smul.addr %s17, 8
    %s19 = scalar_lea.vmem %s1, %s18
    %s20 = sadd.s32 0, 1
  $region9: #{_extract_edges.1} parent=0 // pred_fallthru
    _
  %s21 = sadd.s32 0, 1
  %p22 = scmp.lt.s32.totalorder %s21, 1
  %s23 = scalar_select %p22, %s21, 1
  %s24 = smul.addr %s23, 8
  %s25 = scalar_lea.vmem %s1, %s24
  %s26 = sadd.s32 0, 1
  %p27 = scmp.lt.s32.totalorder %s26, 1
  %s28 = scalar_select %p27, %s26, 1
  %s29 = smul.addr %s28, 8
  %s30 = scalar_lea.vmem %s1, %s29
  %s31 = sadd.s32 0, 1
  %v32 = vld [vmem:[%s0] sm:$0xff]
  %v33 = vlaneseq
  %v34 = vshrl.u32 %v33, 7
  %v35 = vlaneseq
  %v36 = vand.u32 %v35, 127
  %s37 = smul.u32 0, 8
  %v38 = vstv %s37
  %v39 = vadd.s32 %v34, %v38
  %v40 = vmul.u32 %v39, 8
  %v41 = vadd.s32 %v40, %v36
  %42 = vrot.lane.b32.xlu0 %v32, 127
  %v43 = vpop.permute.xlu0 %42
  %v44 = vmax.f32 %v32, %v43
  %45 = vst [vmem:[%s2] sm:$0xff] %v44
  %vm46 = vcmp.ge.f32.partialorder %v32, %v43
  %v47 = vadd.s32 %v41, 1
  %v48 = vsel %vm46, %v41, %v47
  %49 = vst [vmem:[%s3] sm:$0xff] %v48
  %v50 = vrot.slane %v32, 1
  %vm51 = vcmp.eq.s32.totalorder %v34, 7
  %v52 = vld [vmem:[%s30] sm:$0x1]
  %v53 = vlaneseq
  %v54 = vshrl.u32 %v53, 7
  %v55 = vsub.s32 0, %v54
  %v56 = vrot.slane %v52, %v55
  %v57 = vsel %vm51, %v56, %v50
  %v58 = vmax.f32 %v32, %v57
  %59 = vst [vmem:[%s4] sm:$0xff] %v58
  %vm60 = vcmp.ge.f32.partialorder %v32, %v57
  %v61 = vadd.s32 %v41, 8
  %v62 = vsel %vm60, %v41, %v61
  %63 = vst [vmem:[%s5] sm:$0xff] %v62
  // Predicated region
  $region10: #{_extract_edges.1} parent=0 // pred_check
    _
  $region11: #{_extract_edges.1} parent=0 // pred_check_branch
    %65 = sbr.rel (0) target = $region13
  $region12: #{_extract_edges.1} parent=0 // pred_region
    _
  $region13: #{_extract_edges.1} parent=0 // pred_fallthru
    _
  // Predicated region
  $region14: #{_extract_edges.1} parent=0 // pred_check
    _
  $region15: #{_extract_edges.1} parent=0 // pred_check_branch
    %67 = sbr.rel (0) target = $region17
  $region16: #{_extract_edges.1} parent=0 // pred_region
    _
  $region17: #{_extract_edges.1} parent=0 // pred_fallthru
    _
  // Predicated region
  $region18: #{_extract_edges.1} parent=0 // pred_check
    _
  $region19: #{_extract_edges.1} parent=0 // pred_check_branch
    %69 = sbr.rel (0) target = $region21
  $region20: #{_extract_edges.1} parent=0 // pred_region
    _
  $region21: #{_extract_edges.1} parent=0 // pred_fallthru
    _
  // Predicated region
  $region22: #{_extract_edges.1} parent=0 // pred_check
    _
  $region23: #{_extract_edges.1} parent=0 // pred_check_branch
    %71 = sbr.rel (0) target = $region25
  $region24: #{_extract_edges.1} parent=0 // pred_region
    _
  $region25: #{_extract_edges.1} parent=0 // pred_fallthru
    _
  // Predicated region
  $region26: #{_extract_edges.1} parent=0 // pred_check
    _
  $region27: #{_extract_edges.1} parent=0 // pred_check_branch
    %73 = sbr.rel (0) target = $region29
  $region28: #{_extract_edges.1} parent=0 // pred_region
    _
  $region29: #{_extract_edges.1} parent=0 // pred_fallthru
    _
  // Predicated region
  $region30: #{_extract_edges.1} parent=0 // pred_check
    _
  $region31: #{_extract_edges.1} parent=0 // pred_check_branch
    %75 = sbr.rel (0) target = $region33
  $region32: #{_extract_edges.1} parent=0 // pred_region
    _
  $region33: #{_extract_edges.1} parent=0 // pred_fallthru
    _
  // Predicated region
  $region34: #{_extract_edges.1} parent=0 // pred_check
    _
  $region35: #{_extract_edges.1} parent=0 // pred_check_branch
    %77 = sbr.rel (0) target = $region37
  $region36: #{_extract_edges.1} parent=0 // pred_region
    _
  $region37: #{_extract_edges.1} parent=0 // pred_fallthru
    _
  // Predicated region
  $region38: #{_extract_edges.1} parent=0 // pred_check
    _
  $region39: #{_extract_edges.1} parent=0 // pred_check_branch
    %79 = sbr.rel (0) target = $region41
  $region40: #{_extract_edges.1} parent=0 // pred_region
    _
  $region41: #{_extract_edges.1} parent=0 // pred_fallthru
    _

</llo_original>
